<compile_context>
chip_gen: v7x
topology: tpu7x:2x2x1
jax: 0.10.0
libtpu: 0.0.40
codegen_flags: <defaults>
</compile_context>

<pallas_src>
import functools

import jax
import jax.numpy as jnp
import numpy as np
from jax.experimental import pallas as pl
from jax.experimental.pallas import tpu as pltpu

EPS = 1e-5
LANE = 128     # every feature dim padded to one full lane width
MAX_TB = 4096  # batch-tile cap sized for v7x's 64 MiB physical VMEM


def _round_up(x, m):
    return -(-x // m) * m


# ---------------------------------------------------------------------------
# Fused kernel: whole autoencoder forward for one batch tile.
#   refs = (x, w_0, ..., w_{L-1}, t_packed, recon_out, z_out)
#   w_0 is (Din, LANE) bf16, w_{i>0} are (LANE, LANE) bf16,
#   t_packed is (L, LANE) f32, x is (tb, Din) f32, outputs are (tb, LANE) f32.
# ---------------------------------------------------------------------------
def _fused_ae_kernel(*refs, n_layers, n_enc, relu_flags):
    x_ref = refs[0]
    t_ref = refs[1 + n_layers]
    recon_ref = refs[2 + n_layers]
    z_ref = refs[3 + n_layers]

    t_all = t_ref[...]           # (n_layers, LANE) f32, tiny
    h = x_ref[...]               # (tb, Din) f32
    for li in range(n_layers):
        w_ref = refs[1 + li]
        # bf16 operands into the MXU, f32 accumulation; bias/ReLU stay f32.
        y = jnp.dot(h.astype(jnp.bfloat16), w_ref[...],
                    preferred_element_type=jnp.float32)
        y = y + t_all[li:li + 1, :]
        h = jnp.maximum(y, 0.0) if relu_flags[li] else y
        if li == n_enc - 1:      # encoder output -> latent code
            z_ref[...] = h.astype(z_ref.dtype)
    recon_ref[...] = h.astype(recon_ref.dtype)


# ---------------------------------------------------------------------------
# Batch-tile heuristic (generation-aware, keeps >= 2 grid steps for v7x).
# ---------------------------------------------------------------------------
def _pick_batch_tile(B, batch_tile):
    if B <= 8:
        return B                              # single tiny block
    tb = _round_up(pl.cdiv(B, 2), 8)          # >= 2 grid steps -> both v7x TCs
    tb = min(tb, batch_tile, MAX_TB)          # VMEM-safe cap (v7x: 64 MiB)
    return int(max(8, tb))


# ---------------------------------------------------------------------------
# Wrapper: launch the single fused kernel, slice feature padding off.
# ---------------------------------------------------------------------------
def autoencoder_forward(x, layers, n_enc, *, batch_tile=1024):
    """Returns (reconstruction, latent z)."""
    B, Din = x.shape
    n_layers = len(layers)
    relu_flags = tuple(l["relu"] for l in layers)
    assert Din == layers[0]["din"]
    assert Din <= LANE and all(l["dout"] <= LANE for l in layers)

    tb = _pick_batch_tile(B, batch_tile)
    grid = (pl.cdiv(B, tb),)                  # ragged last block is masked by Pallas

    kern = functools.partial(
        _fused_ae_kernel, n_layers=n_layers, n_enc=n_enc, relu_flags=relu_flags
    )

    # Inputs: batch-tiled x (unpadded), replicated bf16 weights, packed f32 biases.
    in_specs = [pl.BlockSpec((tb, Din), lambda i: (i, 0))]
    args = [x.astype(jnp.float32)]
    for l in layers:
        kdim = l["w_pad"].shape[0]
        in_specs.append(pl.BlockSpec((kdim, LANE), lambda i: (0, 0)))
        args.append(l["w_pad"])
    t_packed = jnp.stack([l["t_pad"] for l in layers], axis=0)   # (L, LANE) f32
    in_specs.append(pl.BlockSpec((n_layers, LANE), lambda i: (0, 0)))
    args.append(t_packed)

    flops = 2 * B * sum(l["din"] * l["dout"] for l in layers)
    bytes_accessed = (
        x.size * 4
        + sum(int(a.size) * a.dtype.itemsize for a in args[1:])
        + 2 * B * LANE * 4
    )

    recon_p, z_p = pl.pallas_call(
        kern,
        out_shape=(
            jax.ShapeDtypeStruct((B, LANE), jnp.float32),
            jax.ShapeDtypeStruct((B, LANE), jnp.float32),
        ),
        grid=grid,
        in_specs=in_specs,
        out_specs=(
            pl.BlockSpec((tb, LANE), lambda i: (i, 0)),
            pl.BlockSpec((tb, LANE), lambda i: (i, 0)),
        ),
        compiler_params=pltpu.CompilerParams(dimension_semantics=("parallel",)),
        cost_estimate=pl.CostEstimate(
            flops=int(flops), transcendentals=0, bytes_accessed=int(bytes_accessed)
        ),
    )(*args)

    recon = recon_p[:, : layers[-1]["dout"]]
    z = z_p[:, : layers[n_enc - 1]["dout"]]
    return recon, z


# ---------------------------------------------------------------------------
# Parameter construction (deterministic, mirrors the PyTorch __init__ shapes).
# Weights are stored transposed vs PyTorch: W has shape (in_dim, out_dim).
# ---------------------------------------------------------------------------
def _make_layer(w, b, gamma, beta, running_mean, running_var, relu, k_pad):
    din, dout = w.shape
    if gamma is not None:
        # Eval-mode BN folded into W'/t' using the actual running statistics.
        scale = gamma / jnp.sqrt(running_var + EPS)
        w_fold = w * scale[None, :]
        t_fold = (b - running_mean) * scale + beta
    else:
        w_fold, t_fold = w, b
    w_pad = (
        jnp.zeros((k_pad, LANE), jnp.float32).at[:din, :dout].set(w_fold)
    ).astype(jnp.bfloat16)
    t_pad = jnp.zeros((LANE,), jnp.float32).at[:dout].set(t_fold)
    return dict(
        w=w, b=b, gamma=gamma, beta=beta,
        running_mean=running_mean, running_var=running_var,
        has_bn=gamma is not None, relu=relu, din=din, dout=dout,
        w_pad=w_pad, t_pad=t_pad,
    )


def build_autoencoder_params(key, input_dim, latent_dims):
    """Returns (layers, n_enc).  layers[i] holds raw + folded/padded params."""
    layers = []

    # Encoder: Linear -> BN -> ReLU (-> Dropout, identity in eval) per latent dim.
    prev = input_dim
    first = True
    for ld in latent_dims:
        key, k1, k2, k3, k4 = jax.random.split(key, 5)
        w = jax.random.normal(k1, (prev, ld), jnp.float32) * 0.1
        b = jax.random.normal(k2, (ld,), jnp.float32) * 0.01
        gamma = 1.0 + 0.1 * jax.random.normal(k3, (ld,), jnp.float32)
        beta = 0.1 * jax.random.normal(k4, (ld,), jnp.float32)
        rm = jnp.zeros((ld,), jnp.float32)     # PyTorch init running stats
        rv = jnp.ones((ld,), jnp.float32)
        layers.append(_make_layer(w, b, gamma, beta, rm, rv, relu=True,
                                  k_pad=prev if first else LANE))
        prev, first = ld, False

    # Decoder: reversed dims; last layer is a plain Linear (no BN / ReLU).
    rev = list(latent_dims[::-1]) + [input_dim]
    for i in range(len(rev) - 1):
        din, dout = rev[i], rev[i + 1]
        key, k1, k2, k3, k4 = jax.random.split(key, 5)
        w = jax.random.normal(k1, (din, dout), jnp.float32) * 0.1
        b = jax.random.normal(k2, (dout,), jnp.float32) * 0.01
        if i < len(rev) - 2:
            gamma = 1.0 + 0.1 * jax.random.normal(k3, (dout,), jnp.float32)
            beta = 0.1 * jax.random.normal(k4, (dout,), jnp.float32)
            rm = jnp.zeros((dout,), jnp.float32)
            rv = jnp.ones((dout,), jnp.float32)
            layers.append(_make_layer(w, b, gamma, beta, rm, rv, relu=True,
                                      k_pad=LANE))
        else:
            layers.append(_make_layer(w, b, None, None, None, None, relu=False,
                                      k_pad=LANE))

    return layers, len(latent_dims)


# ---------------------------------------------------------------------------
# Pure-JAX reference (explicit eval-mode BN, f32, no folding) for correctness.
# ---------------------------------------------------------------------------
def autoencoder_forward_ref(x, layers, n_enc):
    h = x
    z = None
    for idx, l in enumerate(layers):
        y = h @ l["w"] + l["b"]
        if l["has_bn"]:
            y = (y - l["running_mean"]) / jnp.sqrt(l["running_var"] + EPS)
            y = y * l["gamma"] + l["beta"]
        if l["relu"]:
            y = jnp.maximum(y, 0.0)
        h = y
        if idx == n_enc - 1:
            z = h
    return h, z


# ---------------------------------------------------------------------------
if __name__ == "__main__":
    input_dim = 32
    latent_dims = [16, 8]

    key = jax.random.PRNGKey(0)
    key, kp = jax.random.split(key)
    layers, n_enc = build_autoencoder_params(kp, input_dim, latent_dims)

    # bf16 MXU operands with f32 accumulation -> relaxed tolerance vs f32 ref.
    for batch in (8, 200):   # 200 exercises grid=2 + masked batch tail
        key, kx = jax.random.split(key)
        x = jax.random.normal(kx, (batch, input_dim), jnp.float32)

        recon, z = autoencoder_forward(x, layers, n_enc)
        recon = jax.block_until_ready(recon)
        z = jax.block_until_ready(z)

        recon_ref, z_ref = autoencoder_forward_ref(x, layers, n_enc)

        assert recon.shape == (batch, input_dim), recon.shape
        assert z.shape == (batch, latent_dims[-1]), z.shape
        np.testing.assert_allclose(np.asarray(recon), np.asarray(recon_ref),
                                   rtol=2e-2, atol=2e-2)
        np.testing.assert_allclose(np.asarray(z), np.asarray(z_ref),
                                   rtol=2e-2, atol=2e-2)

    print("KERNEL_OK")
</pallas_src>

<mosaic_0001>
module attributes {stable_mosaic.version = 11 : i64} {
  func.func @_fused_ae_kernel(%arg0: i32, %arg1: memref<8x32xf32, #tpu.memory_space<vmem>>, %arg2: memref<32x128xbf16, #tpu.memory_space<vmem>>, %arg3: memref<128x128xbf16, #tpu.memory_space<vmem>>, %arg4: memref<128x128xbf16, #tpu.memory_space<vmem>>, %arg5: memref<128x128xbf16, #tpu.memory_space<vmem>>, %arg6: memref<4x128xf32, #tpu.memory_space<vmem>>, %arg7: memref<8x128xf32, #tpu.memory_space<vmem>>, %arg8: memref<8x128xf32, #tpu.memory_space<vmem>>) attributes {dimension_semantics = [#tpu.dimension_semantics<parallel>], iteration_bounds = array<i64: 1>, scalar_prefetch = 0 : i64, scratch_operands = 0 : i64, tpu.core_type = #tpu.core_type<tc>, window_params = [{transform_indices = @transform_0, window_bounds = array<i64: 8, 32>}, {pipeline_mode = #tpu.pipeline_mode<synchronous>, transform_indices = @transform_1, window_bounds = array<i64: 32, 128>}, {pipeline_mode = #tpu.pipeline_mode<synchronous>, transform_indices = @transform_2, window_bounds = array<i64: 128, 128>}, {pipeline_mode = #tpu.pipeline_mode<synchronous>, transform_indices = @transform_3, window_bounds = array<i64: 128, 128>}, {pipeline_mode = #tpu.pipeline_mode<synchronous>, transform_indices = @transform_4, window_bounds = array<i64: 128, 128>}, {pipeline_mode = #tpu.pipeline_mode<synchronous>, transform_indices = @transform_5, window_bounds = array<i64: 4, 128>}, {transform_indices = @transform_6, window_bounds = array<i64: 8, 128>}, {transform_indices = @transform_7, window_bounds = array<i64: 8, 128>}]} {
    %c0 = arith.constant 0 : index
    %c0_0 = arith.constant 0 : index
    %0 = vector.load %arg6[%c0, %c0_0] : memref<4x128xf32, #tpu.memory_space<vmem>>, vector<4x128xf32>
    %c0_1 = arith.constant 0 : index
    %c0_2 = arith.constant 0 : index
    %1 = vector.load %arg1[%c0_1, %c0_2] : memref<8x32xf32, #tpu.memory_space<vmem>>, vector<8x32xf32>
    %2 = arith.truncf %1 : vector<8x32xf32> to vector<8x32xbf16>
    %c0_3 = arith.constant 0 : index
    %c0_4 = arith.constant 0 : index
    %3 = vector.load %arg2[%c0_3, %c0_4] : memref<32x128xbf16, #tpu.memory_space<vmem>>, vector<32x128xbf16>
    %cst = arith.constant dense<0.000000e+00> : vector<8x128xf32>
    %4 = tpu.matmul %2, %3, %cst {dimension_numbers = #tpu.dot_dimension_numbers<[1], [0], [0], [1], [0, 0, 1, 1], [], []>} : vector<8x32xbf16>, vector<32x128xbf16>, vector<8x128xf32> -> vector<8x128xf32>
    %5 = vector.extract_strided_slice %0 {offsets = [0, 0], sizes = [1, 128], strides = [1, 1]} : vector<4x128xf32> to vector<1x128xf32>
    %6 = vector.broadcast %5 : vector<1x128xf32> to vector<8x128xf32>
    %7 = arith.addf %4, %6 : vector<8x128xf32>
    %cst_5 = arith.constant 0.000000e+00 : f32
    %8 = vector.broadcast %cst_5 : f32 to vector<8x128xf32>
    %9 = arith.maximumf %7, %8 : vector<8x128xf32>
    %10 = arith.truncf %9 : vector<8x128xf32> to vector<8x128xbf16>
    %c0_6 = arith.constant 0 : index
    %c0_7 = arith.constant 0 : index
    %11 = vector.load %arg3[%c0_6, %c0_7] : memref<128x128xbf16, #tpu.memory_space<vmem>>, vector<128x128xbf16>
    %cst_8 = arith.constant dense<0.000000e+00> : vector<8x128xf32>
    %12 = tpu.matmul %10, %11, %cst_8 {dimension_numbers = #tpu.dot_dimension_numbers<[1], [0], [0], [1], [0, 0, 1, 1], [], []>} : vector<8x128xbf16>, vector<128x128xbf16>, vector<8x128xf32> -> vector<8x128xf32>
    %13 = vector.extract_strided_slice %0 {offsets = [1, 0], sizes = [1, 128], strides = [1, 1]} : vector<4x128xf32> to vector<1x128xf32>
    %14 = vector.broadcast %13 : vector<1x128xf32> to vector<8x128xf32>
    %15 = arith.addf %12, %14 : vector<8x128xf32>
    %cst_9 = arith.constant 0.000000e+00 : f32
    %16 = vector.broadcast %cst_9 : f32 to vector<8x128xf32>
    %17 = arith.maximumf %15, %16 : vector<8x128xf32>
    %c0_10 = arith.constant 0 : index
    %c0_11 = arith.constant 0 : index
    %18 = vector.load %arg8[%c0_10, %c0_11] : memref<8x128xf32, #tpu.memory_space<vmem>>, vector<8x128xf32>
    tpu.vector_store %arg8[%c0_10, %c0_11], %17 {strides = array<i32>} : memref<8x128xf32, #tpu.memory_space<vmem>>, vector<8x128xf32>,
    %19 = arith.truncf %17 : vector<8x128xf32> to vector<8x128xbf16>
    %c0_12 = arith.constant 0 : index
    %c0_13 = arith.constant 0 : index
    %20 = vector.load %arg4[%c0_12, %c0_13] : memref<128x128xbf16, #tpu.memory_space<vmem>>, vector<128x128xbf16>
    %cst_14 = arith.constant dense<0.000000e+00> : vector<8x128xf32>
    %21 = tpu.matmul %19, %20, %cst_14 {dimension_numbers = #tpu.dot_dimension_numbers<[1], [0], [0], [1], [0, 0, 1, 1], [], []>} : vector<8x128xbf16>, vector<128x128xbf16>, vector<8x128xf32> -> vector<8x128xf32>
    %22 = vector.extract_strided_slice %0 {offsets = [2, 0], sizes = [1, 128], strides = [1, 1]} : vector<4x128xf32> to vector<1x128xf32>
    %23 = vector.broadcast %22 : vector<1x128xf32> to vector<8x128xf32>
    %24 = arith.addf %21, %23 : vector<8x128xf32>
    %cst_15 = arith.constant 0.000000e+00 : f32
    %25 = vector.broadcast %cst_15 : f32 to vector<8x128xf32>
    %26 = arith.maximumf %24, %25 : vector<8x128xf32>
    %27 = arith.truncf %26 : vector<8x128xf32> to vector<8x128xbf16>
    %c0_16 = arith.constant 0 : index
    %c0_17 = arith.constant 0 : index
    %28 = vector.load %arg5[%c0_16, %c0_17] : memref<128x128xbf16, #tpu.memory_space<vmem>>, vector<128x128xbf16>
    %cst_18 = arith.constant dense<0.000000e+00> : vector<8x128xf32>
    %29 = tpu.matmul %27, %28, %cst_18 {dimension_numbers = #tpu.dot_dimension_numbers<[1], [0], [0], [1], [0, 0, 1, 1], [], []>} : vector<8x128xbf16>, vector<128x128xbf16>, vector<8x128xf32> -> vector<8x128xf32>
    %30 = vector.extract_strided_slice %0 {offsets = [3, 0], sizes = [1, 128], strides = [1, 1]} : vector<4x128xf32> to vector<1x128xf32>
    %31 = vector.broadcast %30 : vector<1x128xf32> to vector<8x128xf32>
    %32 = arith.addf %29, %31 : vector<8x128xf32>
    %c0_19 = arith.constant 0 : index
    %c0_20 = arith.constant 0 : index
    %33 = vector.load %arg7[%c0_19, %c0_20] : memref<8x128xf32, #tpu.memory_space<vmem>>, vector<8x128xf32>
    tpu.vector_store %arg7[%c0_19, %c0_20], %32 {strides = array<i32>} : memref<8x128xf32, #tpu.memory_space<vmem>>, vector<8x128xf32>,
    return
  }
  func.func @transform_0(%arg0: i32) -> (i32, i32) {
    %c0_i32 = arith.constant 0 : i32
    %c0_i32_0 = arith.constant 0 : i32
    return %arg0, %c0_i32 : i32, i32
  }
  func.func @transform_1(%arg0: i32) -> (i32, i32) {
    %c0_i32 = arith.constant 0 : i32
    %c0_i32_0 = arith.constant 0 : i32
    %c0_i32_1 = arith.constant 0 : i32
    return %c0_i32, %c0_i32_0 : i32, i32
  }
  func.func @transform_2(%arg0: i32) -> (i32, i32) {
    %c0_i32 = arith.constant 0 : i32
    %c0_i32_0 = arith.constant 0 : i32
    %c0_i32_1 = arith.constant 0 : i32
    return %c0_i32, %c0_i32_0 : i32, i32
  }
  func.func @transform_3(%arg0: i32) -> (i32, i32) {
    %c0_i32 = arith.constant 0 : i32
    %c0_i32_0 = arith.constant 0 : i32
    %c0_i32_1 = arith.constant 0 : i32
    return %c0_i32, %c0_i32_0 : i32, i32
  }
  func.func @transform_4(%arg0: i32) -> (i32, i32) {
    %c0_i32 = arith.constant 0 : i32
    %c0_i32_0 = arith.constant 0 : i32
    %c0_i32_1 = arith.constant 0 : i32
    return %c0_i32, %c0_i32_0 : i32, i32
  }
  func.func @transform_5(%arg0: i32) -> (i32, i32) {
    %c0_i32 = arith.constant 0 : i32
    %c0_i32_0 = arith.constant 0 : i32
    %c0_i32_1 = arith.constant 0 : i32
    return %c0_i32, %c0_i32_0 : i32, i32
  }
  func.func @transform_6(%arg0: i32) -> (i32, i32) {
    %c0_i32 = arith.constant 0 : i32
    %c0_i32_0 = arith.constant 0 : i32
    return %arg0, %c0_i32 : i32, i32
  }
  func.func @transform_7(%arg0: i32) -> (i32, i32) {
    %c0_i32 = arith.constant 0 : i32
    %c0_i32_0 = arith.constant 0 : i32
    return %arg0, %c0_i32 : i32, i32
  }
}

</mosaic_0001>

<llo_original>
// kernel: tpu_custom_call.1
$region0: #{tpu_custom_call.1}
  #allocation0 [shape = 'u32[]', space=smem, size = 0x4, offset = 0x4, fixed_abs, tag = 'smem constant byte address 0x4 - core index']
  #allocation1 [shape = 'u32[144,128]{1,0:T(1,128)}', space=vmem, size = 0x12000, scoped, tag = 'internal scratch']
  %s0 = inlined_call_operand.hbm [shape: f32[8,32], index: 0, kind: input, shape index: {}]
  %s1 = inlined_call_operand.hbm [shape: bf16[32,128], index: 1, kind: input, shape index: {}]
  %s2 = inlined_call_operand.hbm [shape: bf16[128,128], index: 2, kind: input, shape index: {}]
  %s3 = inlined_call_operand.hbm [shape: bf16[128,128], index: 3, kind: input, shape index: {}]
  %s4 = inlined_call_operand.hbm [shape: bf16[128,128], index: 4, kind: input, shape index: {}]
  %s5 = inlined_call_operand.vmem [shape: f32[4,128], index: 5, kind: input, shape index: {}]
  %s6 = inlined_call_operand.hbm [shape: f32[8,128], index: 6, kind: output, shape index: {0}]
  %s7 = inlined_call_operand.hbm [shape: f32[8,128], index: 7, kind: output, shape index: {1}]
  %8 = xla_tuple %s6, %s7
  %s9 = sld [smem:[#allocation0]]
  $region62: #{tpu_custom_call.1} parent=0
    _
  %s11 = ssub.s32 1, %s9
  %s12 = scalar_select 0, %s11, %s9
  $region1: #{tpu_custom_call.1} parent=0
    #allocation2 [shape = 'u8[4096]{0}', space=vmem, size = 0x1000, scoped, tag = 'input window, operand 0, single buffered']
    #allocation3 [shape = 's32[1]{0}', space=sflag, size = 0x4, scoped, tag = 'scoped memory for tpu_custom_call.1']
    #allocation4 [shape = 's32[1]{0}', space=sflag, size = 0x4, scoped, tag = 'scoped memory for tpu_custom_call.1']
    #allocation5 [shape = 'u8[8192]{0}', space=vmem, size = 0x2000, scoped, tag = 'input window, operand 1, single buffered']
    #allocation6 [shape = 's32[1]{0}', space=sflag, size = 0x4, scoped, tag = 'scoped memory for tpu_custom_call.1']
    #allocation7 [shape = 'u8[32768]{0}', space=vmem, size = 0x8000, scoped, tag = 'input window, operand 2, single buffered']
    #allocation8 [shape = 'u8[32768]{0}', space=vmem, size = 0x8000, scoped, tag = 'input window, operand 3, single buffered']
    #allocation9 [shape = 's32[1]{0}', space=sflag, size = 0x4, scoped, tag = 'scoped memory for tpu_custom_call.1']
    #allocation10 [shape = 'u8[32768]{0}', space=vmem, size = 0x8000, scoped, tag = 'input window, operand 4, single buffered']
    #allocation11 [shape = 'u8[4096]{0}', space=vmem, size = 0x1000, scoped, tag = 'output window, operand 0, single buffered']
    #allocation12 [shape = 'u8[4096]{0}', space=vmem, size = 0x1000, scoped, tag = 'output window, operand 1, single buffered']
    #allocation13 [shape = 's32[1]{0}', space=sflag, size = 0x4, scoped, tag = 'scoped memory for tpu_custom_call.1']
    %13 = vsyncpa [#allocation3], 0
    %14 = vsyncpa [#allocation6], 0
    %15 = vsyncpa [#allocation9], 0
    %16 = vsyncpa [#allocation4], 0
    %17 = vsyncpa [#allocation13], 0
    // Predicated region
    $region2: #{tpu_custom_call.1} parent=1 // pred_check
      _
    $region3: #{tpu_custom_call.1} parent=1 // pred_check_branch
      %19 = sbr.rel (0) target = $region5
    $region4: #{tpu_custom_call.1} parent=1 // pred_region
      %s21 = ssub.s32 128, 128
      %22 = vsyncadd [#allocation3], %s21
      %s24 = sshll.u32 [#allocation2], 4
      %s25 = int_to_ptr.vmem [resolvable:$true] %s24
      %27 = dma.hbm_to_vmem [thread:$0]  %s0, 128, %s25, [#allocation3]
    $region5: #{tpu_custom_call.1} parent=1 // pred_fallthru
      _
    // Predicated region
    $region6: #{tpu_custom_call.1} parent=1 // pred_check
      _
    $region7: #{tpu_custom_call.1} parent=1 // pred_check_branch
      %29 = sbr.rel (0) target = $region9
    $region8: #{tpu_custom_call.1} parent=1 // pred_region
      %s31 = ssub.s32 256, 256
      %32 = vsyncadd [#allocation6], %s31
      %s33 = sshll.u32 [#allocation5], 4
      %s34 = int_to_ptr.vmem [resolvable:$true] %s33
      %39 = dma.hbm_to_vmem [thread:$0]  %s1, 256, %s34, [#allocation6], 64, 64, 4
    $region9: #{tpu_custom_call.1} parent=1 // pred_fallthru
      _
    // Predicated region
    $region10: #{tpu_custom_call.1} parent=1 // pred_check
      _
    $region11: #{tpu_custom_call.1} parent=1 // pred_check_branch
      %41 = sbr.rel (0) target = $region13
    $region12: #{tpu_custom_call.1} parent=1 // pred_region
      %s43 = ssub.s32 1024, 1024
      %44 = vsyncadd [#allocation6], %s43
      %s45 = sshll.u32 [#allocation7], 4
      %s46 = int_to_ptr.vmem [resolvable:$true] %s45
      %51 = dma.hbm_to_vmem [thread:$0]  %s2, 1024, %s46, [#allocation6], 64, 64, 4
    $region13: #{tpu_custom_call.1} parent=1 // pred_fallthru
      _
    // Predicated region
    $region14: #{tpu_custom_call.1} parent=1 // pred_check
      _
    $region15: #{tpu_custom_call.1} parent=1 // pred_check_branch
      %53 = sbr.rel (0) target = $region17
    $region16: #{tpu_custom_call.1} parent=1 // pred_region
      %s55 = ssub.s32 1024, 1024
      %56 = vsyncadd [#allocation9], %s55
      %s57 = sshll.u32 [#allocation8], 4
      %s58 = int_to_ptr.vmem [resolvable:$true] %s57
      %63 = dma.hbm_to_vmem [thread:$0]  %s3, 1024, %s58, [#allocation9], 64, 64, 4
    $region17: #{tpu_custom_call.1} parent=1 // pred_fallthru
      _
    // Predicated region
    $region18: #{tpu_custom_call.1} parent=1 // pred_check
      _
    $region19: #{tpu_custom_call.1} parent=1 // pred_check_branch
      %65 = sbr.rel (0) target = $region21
    $region20: #{tpu_custom_call.1} parent=1 // pred_region
      %s67 = ssub.s32 1024, 1024
      %68 = vsyncadd [#allocation9], %s67
      %s69 = sshll.u32 [#allocation10], 4
      %s70 = int_to_ptr.vmem [resolvable:$true] %s69
      %75 = dma.hbm_to_vmem [thread:$0]  %s4, 1024, %s70, [#allocation9], 64, 64, 4
    $region21: #{tpu_custom_call.1} parent=1 // pred_fallthru
      _
    // Predicated region
    $region22: #{tpu_custom_call.1} parent=1 // pred_check
      _
    $region23: #{tpu_custom_call.1} parent=1 // pred_check_branch
      %77 = sbr.rel (0) target = $region25
    $region24: #{tpu_custom_call.1} parent=1 // pred_region
      _
    $region25: #{tpu_custom_call.1} parent=1 // pred_fallthru
      _
    // Predicated region
    $region26: #{tpu_custom_call.1} parent=1 // pred_check
      _
    $region27: #{tpu_custom_call.1} parent=1 // pred_check_branch
      %79 = sbr.rel (0) target = $region29
    $region28: #{tpu_custom_call.1} parent=1 // pred_region
      %80 = dma.done [#allocation3], 128
    $region29: #{tpu_custom_call.1} parent=1 // pred_fallthru
      _
    // Predicated region
    $region30: #{tpu_custom_call.1} parent=1 // pred_check
      _
    $region31: #{tpu_custom_call.1} parent=1 // pred_check_branch
      %82 = sbr.rel (0) target = $region33
    $region32: #{tpu_custom_call.1} parent=1 // pred_region
      %83 = dma.done [#allocation6], 256
    $region33: #{tpu_custom_call.1} parent=1 // pred_fallthru
      _
    // Predicated region
    $region34: #{tpu_custom_call.1} parent=1 // pred_check
      _
    $region35: #{tpu_custom_call.1} parent=1 // pred_check_branch
      %85 = sbr.rel (0) target = $region37
    $region36: #{tpu_custom_call.1} parent=1 // pred_region
      %86 = dma.done [#allocation6], 1024
    $region37: #{tpu_custom_call.1} parent=1 // pred_fallthru
      _
    // Predicated region
    $region38: #{tpu_custom_call.1} parent=1 // pred_check
      _
    $region39: #{tpu_custom_call.1} parent=1 // pred_check_branch
      %88 = sbr.rel (0) target = $region41
    $region40: #{tpu_custom_call.1} parent=1 // pred_region
      %89 = dma.done [#allocation9], 1024
    $region41: #{tpu_custom_call.1} parent=1 // pred_fallthru
      _
    // Predicated region
    $region42: #{tpu_custom_call.1} parent=1 // pred_check
      _
    $region43: #{tpu_custom_call.1} parent=1 // pred_check_branch
      %91 = sbr.rel (0) target = $region45
    $region44: #{tpu_custom_call.1} parent=1 // pred_region
      %92 = dma.done [#allocation9], 1024
    $region45: #{tpu_custom_call.1} parent=1 // pred_fallthru
      _
    %v94 = vld [vmem:[%s5] sm:$0xf]
    %v95 = vld [vmem:[#allocation2] sm:$0xff]
    %v96 = vpack.c.bf16 %v95, %v95
    %v97 = vld [vmem:[#allocation5] sm:$0xf]
    %v98 = vld [vmem:[#allocation5 + $0x4] sm:$0xf]
    %v99 = vld [vmem:[#allocation5 + $0x8] sm:$0xf]
    %v100 = vld [vmem:[#allocation5 + $0xc] sm:$0xf]
    %v101 = vlaneseq
    %v102 = vshrl.u32 %v101, 7
    %v103 = vsub.s32 0, %v102
    %v104 = vrot.slane %v94, %v103
    %v109 = vunpack.c.l.b16 %v97
    %v110 = vunpack.c.l.b16 %v98
    %v111 = vunpack.c.l.b16 %v99
    %v112 = vunpack.c.l.b16 %v100
    %v113 = vpack.c.b16 %v110, %v109
    %v114 = vpack.c.b16 %v112, %v111
    %vm117 = vcmask 261120
    %v119 = vsel %vm117, %v96, 0
    %121 = vmatprep.subr.bf16.mxu0 0
    %122 = vmatpush1.bf16.msra.mxu0 %v113
    %123 = vmatprep.subr.bf16.mxu0 0
    %124 = vmatpush1.bf16.msra.mxu0 %v114
    %125 = vmatprep.subr.bf16.mxu0 0
    %126 = vmatpush1.bf16.msra.mxu0 0
    %127 = vmatprep.subr.bf16.mxu0 0
    %128 = vmatpush1.bf16.msra.mxu0 0
    %129 = vmatprep.subr.bf16.mxu0 0
    %130 = vmatpush1.bf16.msra.mxu0 0
    %131 = vmatprep.subr.bf16.mxu0 0
    %132 = vmatpush1.bf16.msra.mxu0 0
    %133 = vmatprep.subr.bf16.mxu0 0
    %134 = vmatpush1.bf16.msra.mxu0 0
    %135 = vmatprep.subr.bf16.mxu0 0
    %136 = vmatpush1.bf16.msra.mxu0 0
    %137 = vmatprep.subr.bf16.mxu0 0
    %138 = vmatpush1.bf16.msra.mxu0 0
    %139 = vmatprep.subr.bf16.mxu0 0
    %140 = vmatpush1.bf16.msra.mxu0 0
    %141 = vmatprep.subr.bf16.mxu0 0
    %142 = vmatpush1.bf16.msra.mxu0 0
    %143 = vmatprep.subr.bf16.mxu0 0
    %144 = vmatpush1.bf16.msra.mxu0 0
    %145 = vmatprep.subr.bf16.mxu0 0
    %146 = vmatpush1.bf16.msra.mxu0 0
    %147 = vmatprep.subr.bf16.mxu0 0
    %148 = vmatpush1.bf16.msra.mxu0 0
    %149 = vmatprep.subr.bf16.mxu0 0
    %150 = vmatpush1.bf16.msra.mxu0 0
    %151 = vmatprep.subr.bf16.mxu0 0
    %152 = vmatpush1.bf16.msra.mxu0 0
    %153 = vmatprep.mubr.bf16.mxu0 0
    %154 = vmatmul.mubr.bf16.gmra.mrb[0].mxu0 %v119
    %v155 = vpop.f32.mrb[0].mxu0
    %v156 = vadd.f32 %v104, %v155
    %v157 = vpop.f32.mrb[0].mxu0
    %v158 = vpop.f32.mrb[0].mxu0
    %v159 = vpop.f32.mrb[0].mxu0
    %160 = vdwg.mxu0
    %v161 = vmax.f32 %v156, 0.0
    %v162 = vpack.c.bf16 %v161, %v161
    %v163 = vld [vmem:[#allocation7] sm:$0xf]
    %v164 = vld [vmem:[#allocation7 + $0x4] sm:$0xf]
    %v165 = vld [vmem:[#allocation7 + $0x8] sm:$0xf]
    %v166 = vld [vmem:[#allocation7 + $0xc] sm:$0xf]
    %v167 = vld [vmem:[#allocation7 + $0x10] sm:$0xf]
    %v168 = vld [vmem:[#allocation7 + $0x14] sm:$0xf]
    %v169 = vld [vmem:[#allocation7 + $0x18] sm:$0xf]
    %v170 = vld [vmem:[#allocation7 + $0x1c] sm:$0xf]
    %v171 = vld [vmem:[#allocation7 + $0x20] sm:$0xf]
    %v172 = vld [vmem:[#allocation7 + $0x24] sm:$0xf]
    %v173 = vld [vmem:[#allocation7 + $0x28] sm:$0xf]
    %v174 = vld [vmem:[#allocation7 + $0x2c] sm:$0xf]
    %v175 = vld [vmem:[#allocation7 + $0x30] sm:$0xf]
    %v176 = vld [vmem:[#allocation7 + $0x34] sm:$0xf]
    %v177 = vld [vmem:[#allocation7 + $0x38] sm:$0xf]
    %v178 = vld [vmem:[#allocation7 + $0x3c] sm:$0xf]
    %v179 = vlaneseq
    %v180 = vshrl.u32 %v179, 7
    %v181 = vsub.s32 1, %v180
    %v182 = vrot.slane %v94, %v181
    %v199 = vunpack.c.l.b16 %v163
    %v200 = vunpack.c.l.b16 %v164
    %v201 = vunpack.c.l.b16 %v165
    %v202 = vunpack.c.l.b16 %v166
    %v203 = vunpack.c.l.b16 %v167
    %v204 = vunpack.c.l.b16 %v168
    %v205 = vunpack.c.l.b16 %v169
    %v206 = vunpack.c.l.b16 %v170
    %v207 = vunpack.c.l.b16 %v171
    %v208 = vunpack.c.l.b16 %v172
    %v209 = vunpack.c.l.b16 %v173
    %v210 = vunpack.c.l.b16 %v174
    %v211 = vunpack.c.l.b16 %v175
    %v212 = vunpack.c.l.b16 %v176
    %v213 = vunpack.c.l.b16 %v177
    %v214 = vunpack.c.l.b16 %v178
    %v215 = vpack.c.b16 %v200, %v199
    %v216 = vpack.c.b16 %v202, %v201
    %v217 = vpack.c.b16 %v204, %v203
    %v218 = vpack.c.b16 %v206, %v205
    %v219 = vpack.c.b16 %v208, %v207
    %v220 = vpack.c.b16 %v210, %v209
    %v221 = vpack.c.b16 %v212, %v211
    %v222 = vpack.c.b16 %v214, %v213
    %231 = vmatprep.subr.bf16.mxu0 0
    %232 = vmatpush1.bf16.msra.mxu0 %v215
    %233 = vmatprep.subr.bf16.mxu0 0
    %234 = vmatpush1.bf16.msra.mxu0 %v216
    %235 = vmatprep.subr.bf16.mxu0 0
    %236 = vmatpush1.bf16.msra.mxu0 %v217
    %237 = vmatprep.subr.bf16.mxu0 0
    %238 = vmatpush1.bf16.msra.mxu0 %v218
    %239 = vmatprep.subr.bf16.mxu0 0
    %240 = vmatpush1.bf16.msra.mxu0 %v219
    %241 = vmatprep.subr.bf16.mxu0 0
    %242 = vmatpush1.bf16.msra.mxu0 %v220
    %243 = vmatprep.subr.bf16.mxu0 0
    %244 = vmatpush1.bf16.msra.mxu0 %v221
    %245 = vmatprep.subr.bf16.mxu0 0
    %246 = vmatpush1.bf16.msra.mxu0 %v222
    %247 = vmatprep.subr.bf16.mxu0 0
    %248 = vmatpush1.bf16.msra.mxu0 0
    %249 = vmatprep.subr.bf16.mxu0 0
    %250 = vmatpush1.bf16.msra.mxu0 0
    %251 = vmatprep.subr.bf16.mxu0 0
    %252 = vmatpush1.bf16.msra.mxu0 0
    %253 = vmatprep.subr.bf16.mxu0 0
    %254 = vmatpush1.bf16.msra.mxu0 0
    %255 = vmatprep.subr.bf16.mxu0 0
    %256 = vmatpush1.bf16.msra.mxu0 0
    %257 = vmatprep.subr.bf16.mxu0 0
    %258 = vmatpush1.bf16.msra.mxu0 0
    %259 = vmatprep.subr.bf16.mxu0 0
    %260 = vmatpush1.bf16.msra.mxu0 0
    %261 = vmatprep.subr.bf16.mxu0 0
    %262 = vmatpush1.bf16.msra.mxu0 0
    %263 = vmatprep.mubr.bf16.mxu0 0
    %264 = vmatmul.mubr.bf16.gmra.mrb[0].mxu0 %v162
    %v265 = vpop.f32.mrb[0].mxu0
    %v266 = vadd.f32 %v182, %v265
    %v267 = vpop.f32.mrb[0].mxu0
    %v268 = vpop.f32.mrb[0].mxu0
    %v269 = vpop.f32.mrb[0].mxu0
    %270 = vdwg.mxu0
    %v271 = vmax.f32 %v266, 0.0
    %272 = vst [vmem:[#allocation12] sm:$0xff] %v271
    %v273 = vpack.c.bf16 %v271, %v271
    %v274 = vld [vmem:[#allocation8] sm:$0xf]
    %v275 = vld [vmem:[#allocation8 + $0x4] sm:$0xf]
    %v276 = vld [vmem:[#allocation8 + $0x8] sm:$0xf]
    %v277 = vld [vmem:[#allocation8 + $0xc] sm:$0xf]
    %v278 = vld [vmem:[#allocation8 + $0x10] sm:$0xf]
    %v279 = vld [vmem:[#allocation8 + $0x14] sm:$0xf]
    %v280 = vld [vmem:[#allocation8 + $0x18] sm:$0xf]
    %v281 = vld [vmem:[#allocation8 + $0x1c] sm:$0xf]
    %v282 = vld [vmem:[#allocation8 + $0x20] sm:$0xf]
    %v283 = vld [vmem:[#allocation8 + $0x24] sm:$0xf]
    %v284 = vld [vmem:[#allocation8 + $0x28] sm:$0xf]
    %v285 = vld [vmem:[#allocation8 + $0x2c] sm:$0xf]
    %v286 = vld [vmem:[#allocation8 + $0x30] sm:$0xf]
    %v287 = vld [vmem:[#allocation8 + $0x34] sm:$0xf]
    %v288 = vld [vmem:[#allocation8 + $0x38] sm:$0xf]
    %v289 = vld [vmem:[#allocation8 + $0x3c] sm:$0xf]
    %v290 = vlaneseq
    %v291 = vshrl.u32 %v290, 7
    %v292 = vsub.s32 2, %v291
    %v293 = vrot.slane %v94, %v292
    %v310 = vunpack.c.l.b16 %v274
    %v311 = vunpack.c.l.b16 %v275
    %v312 = vunpack.c.l.b16 %v276
    %v313 = vunpack.c.l.b16 %v277
    %v314 = vunpack.c.l.b16 %v278
    %v315 = vunpack.c.l.b16 %v279
    %v316 = vunpack.c.l.b16 %v280
    %v317 = vunpack.c.l.b16 %v281
    %v318 = vunpack.c.l.b16 %v282
    %v319 = vunpack.c.l.b16 %v283
    %v320 = vunpack.c.l.b16 %v284
    %v321 = vunpack.c.l.b16 %v285
    %v322 = vunpack.c.l.b16 %v286
    %v323 = vunpack.c.l.b16 %v287
    %v324 = vunpack.c.l.b16 %v288
    %v325 = vunpack.c.l.b16 %v289
    %v326 = vpack.c.b16 %v311, %v310
    %v327 = vpack.c.b16 %v313, %v312
    %v328 = vpack.c.b16 %v315, %v314
    %v329 = vpack.c.b16 %v317, %v316
    %v330 = vpack.c.b16 %v319, %v318
    %v331 = vpack.c.b16 %v321, %v320
    %v332 = vpack.c.b16 %v323, %v322
    %v333 = vpack.c.b16 %v325, %v324
    %342 = vmatprep.subr.bf16.mxu0 0
    %343 = vmatpush1.bf16.msra.mxu0 %v326
    %344 = vmatprep.subr.bf16.mxu0 0
    %345 = vmatpush1.bf16.msra.mxu0 %v327
    %346 = vmatprep.subr.bf16.mxu0 0
    %347 = vmatpush1.bf16.msra.mxu0 %v328
    %348 = vmatprep.subr.bf16.mxu0 0
    %349 = vmatpush1.bf16.msra.mxu0 %v329
    %350 = vmatprep.subr.bf16.mxu0 0
    %351 = vmatpush1.bf16.msra.mxu0 %v330
    %352 = vmatprep.subr.bf16.mxu0 0
    %353 = vmatpush1.bf16.msra.mxu0 %v331
    %354 = vmatprep.subr.bf16.mxu0 0
    %355 = vmatpush1.bf16.msra.mxu0 %v332
    %356 = vmatprep.subr.bf16.mxu0 0
    %357 = vmatpush1.bf16.msra.mxu0 %v333
    %358 = vmatprep.subr.bf16.mxu0 0
    %359 = vmatpush1.bf16.msra.mxu0 0
    %360 = vmatprep.subr.bf16.mxu0 0
    %361 = vmatpush1.bf16.msra.mxu0 0
    %362 = vmatprep.subr.bf16.mxu0 0
    %363 = vmatpush1.bf16.msra.mxu0 0
    %364 = vmatprep.subr.bf16.mxu0 0
    %365 = vmatpush1.bf16.msra.mxu0 0
    %366 = vmatprep.subr.bf16.mxu0 0
    %367 = vmatpush1.bf16.msra.mxu0 0
    %368 = vmatprep.subr.bf16.mxu0 0
    %369 = vmatpush1.bf16.msra.mxu0 0
    %370 = vmatprep.subr.bf16.mxu0 0
    %371 = vmatpush1.bf16.msra.mxu0 0
    %372 = vmatprep.subr.bf16.mxu0 0
    %373 = vmatpush1.bf16.msra.mxu0 0
    %374 = vmatprep.mubr.bf16.mxu0 0
    %375 = vmatmul.mubr.bf16.gmra.mrb[0].mxu0 %v273
    %v376 = vpop.f32.mrb[0].mxu0
    %v377 = vadd.f32 %v293, %v376
    %v378 = vpop.f32.mrb[0].mxu0
    %v379 = vpop.f32.mrb[0].mxu0
    %v380 = vpop.f32.mrb[0].mxu0
    %381 = vdwg.mxu0
    %v382 = vmax.f32 %v377, 0.0
    %v383 = vpack.c.bf16 %v382, %v382
    %v384 = vld [vmem:[#allocation10] sm:$0xf]
    %v385 = vld [vmem:[#allocation10 + $0x4] sm:$0xf]
    %v386 = vld [vmem:[#allocation10 + $0x8] sm:$0xf]
    %v387 = vld [vmem:[#allocation10 + $0xc] sm:$0xf]
    %v388 = vld [vmem:[#allocation10 + $0x10] sm:$0xf]
    %v389 = vld [vmem:[#allocation10 + $0x14] sm:$0xf]
    %v390 = vld [vmem:[#allocation10 + $0x18] sm:$0xf]
    %v391 = vld [vmem:[#allocation10 + $0x1c] sm:$0xf]
    %v392 = vld [vmem:[#allocation10 + $0x20] sm:$0xf]
    %v393 = vld [vmem:[#allocation10 + $0x24] sm:$0xf]
    %v394 = vld [vmem:[#allocation10 + $0x28] sm:$0xf]
    %v395 = vld [vmem:[#allocation10 + $0x2c] sm:$0xf]
    %v396 = vld [vmem:[#allocation10 + $0x30] sm:$0xf]
    %v397 = vld [vmem:[#allocation10 + $0x34] sm:$0xf]
    %v398 = vld [vmem:[#allocation10 + $0x38] sm:$0xf]
    %v399 = vld [vmem:[#allocation10 + $0x3c] sm:$0xf]
    %v400 = vlaneseq
    %v401 = vshrl.u32 %v400, 7
    %v402 = vsub.s32 3, %v401
    %v403 = vrot.slane %v94, %v402
    %v420 = vunpack.c.l.b16 %v384
    %v421 = vunpack.c.l.b16 %v385
    %v422 = vunpack.c.l.b16 %v386
    %v423 = vunpack.c.l.b16 %v387
    %v424 = vunpack.c.l.b16 %v388
    %v425 = vunpack.c.l.b16 %v389
    %v426 = vunpack.c.l.b16 %v390
    %v427 = vunpack.c.l.b16 %v391
    %v428 = vunpack.c.l.b16 %v392
    %v429 = vunpack.c.l.b16 %v393
    %v430 = vunpack.c.l.b16 %v394
    %v431 = vunpack.c.l.b16 %v395
    %v432 = vunpack.c.l.b16 %v396
    %v433 = vunpack.c.l.b16 %v397
    %v434 = vunpack.c.l.b16 %v398
    %v435 = vunpack.c.l.b16 %v399
    %v436 = vpack.c.b16 %v421, %v420
    %v437 = vpack.c.b16 %v423, %v422
    %v438 = vpack.c.b16 %v425, %v424
    %v439 = vpack.c.b16 %v427, %v426
    %v440 = vpack.c.b16 %v429, %v428
    %v441 = vpack.c.b16 %v431, %v430
    %v442 = vpack.c.b16 %v433, %v432
    %v443 = vpack.c.b16 %v435, %v434
    %452 = vmatprep.subr.bf16.mxu0 0
    %453 = vmatpush1.bf16.msra.mxu0 %v436
    %454 = vmatprep.subr.bf16.mxu0 0
    %455 = vmatpush1.bf16.msra.mxu0 %v437
    %456 = vmatprep.subr.bf16.mxu0 0
    %457 = vmatpush1.bf16.msra.mxu0 %v438
    %458 = vmatprep.subr.bf16.mxu0 0
    %459 = vmatpush1.bf16.msra.mxu0 %v439
    %460 = vmatprep.subr.bf16.mxu0 0
    %461 = vmatpush1.bf16.msra.mxu0 %v440
    %462 = vmatprep.subr.bf16.mxu0 0
    %463 = vmatpush1.bf16.msra.mxu0 %v441
    %464 = vmatprep.subr.bf16.mxu0 0
    %465 = vmatpush1.bf16.msra.mxu0 %v442
    %466 = vmatprep.subr.bf16.mxu0 0
    %467 = vmatpush1.bf16.msra.mxu0 %v443
    %468 = vmatprep.subr.bf16.mxu0 0
    %469 = vmatpush1.bf16.msra.mxu0 0
    %470 = vmatprep.subr.bf16.mxu0 0
    %471 = vmatpush1.bf16.msra.mxu0 0
    %472 = vmatprep.subr.bf16.mxu0 0
    %473 = vmatpush1.bf16.msra.mxu0 0
    %474 = vmatprep.subr.bf16.mxu0 0
    %475 = vmatpush1.bf16.msra.mxu0 0
    %476 = vmatprep.subr.bf16.mxu0 0
    %477 = vmatpush1.bf16.msra.mxu0 0
    %478 = vmatprep.subr.bf16.mxu0 0
    %479 = vmatpush1.bf16.msra.mxu0 0
    %480 = vmatprep.subr.bf16.mxu0 0
    %481 = vmatpush1.bf16.msra.mxu0 0
    %482 = vmatprep.subr.bf16.mxu0 0
    %483 = vmatpush1.bf16.msra.mxu0 0
    %484 = vmatprep.mubr.bf16.mxu0 0
    %485 = vmatmul.mubr.bf16.gmra.mrb[0].mxu0 %v383
    %v486 = vpop.f32.mrb[0].mxu0
    %v487 = vadd.f32 %v403, %v486
    %v488 = vpop.f32.mrb[0].mxu0
    %v489 = vpop.f32.mrb[0].mxu0
    %v490 = vpop.f32.mrb[0].mxu0
    %491 = vdwg.mxu0
    %492 = vst [vmem:[#allocation11] sm:$0xff] %v487
    // Predicated region
    $region46: #{tpu_custom_call.1} parent=1 // pred_check
      _
    $region47: #{tpu_custom_call.1} parent=1 // pred_check_branch
      %494 = sbr.rel (0) target = $region49
    $region48: #{tpu_custom_call.1} parent=1 // pred_region
      %s496 = ssub.s32 128, 128
      %497 = vsyncadd [#allocation4], %s496
      %s499 = sshll.u32 [#allocation11], 4
      %s500 = int_to_ptr.vmem [resolvable:$true] %s499
      %502 = dma.vmem_to_hbm [thread:$0]  %s500, 128, %s6, [#allocation4]
    $region49: #{tpu_custom_call.1} parent=1 // pred_fallthru
      _
    // Predicated region
    $region50: #{tpu_custom_call.1} parent=1 // pred_check
      _
    $region51: #{tpu_custom_call.1} parent=1 // pred_check_branch
      %504 = sbr.rel (0) target = $region53
    $region52: #{tpu_custom_call.1} parent=1 // pred_region
      %s506 = ssub.s32 128, 128
      %507 = vsyncadd [#allocation13], %s506
      %s509 = sshll.u32 [#allocation12], 4
      %s510 = int_to_ptr.vmem [resolvable:$true] %s509
      %512 = dma.vmem_to_hbm [thread:$0]  %s510, 128, %s7, [#allocation13]
    $region53: #{tpu_custom_call.1} parent=1 // pred_fallthru
      _
    // Predicated region
    $region54: #{tpu_custom_call.1} parent=1 // pred_check
      _
    $region55: #{tpu_custom_call.1} parent=1 // pred_check_branch
      %514 = sbr.rel (0) target = $region57
    $region56: #{tpu_custom_call.1} parent=1 // pred_region
      %515 = dma.done [#allocation4], 128
    $region57: #{tpu_custom_call.1} parent=1 // pred_fallthru
      _
    // Predicated region
    $region58: #{tpu_custom_call.1} parent=1 // pred_check
      _
    $region59: #{tpu_custom_call.1} parent=1 // pred_check_branch
      %517 = sbr.rel (0) target = $region61
    $region60: #{tpu_custom_call.1} parent=1 // pred_region
      %518 = dma.done [#allocation13], 128
    $region61: #{tpu_custom_call.1} parent=1 // pred_fallthru
      _
    %519 = vsyncpa [#allocation3], 1
    %520 = vsyncpa [#allocation6], 1
    %521 = vsyncpa [#allocation9], 1
    %522 = vsyncpa [#allocation4], 1
    %523 = vsyncpa [#allocation13], 1

</llo_original>
